<compile_context>
chip_gen: v6e
topology: v6e:2x2x1
jax: 0.10.0
libtpu: 0.0.40
codegen_flags: <defaults>
</compile_context>

<pallas_src>
import functools
import math

import jax
import jax.numpy as jnp
from jax import lax
from jax.experimental import pallas as pl
from jax.experimental.pallas import tpu as pltpu

NEG_INF = -1e30  # finite "masked" value; scores/softmax stay in f32


def _pick_tile(dim, preferred):
    """Largest tile <= `preferred` that evenly divides `dim` (full dim if small)."""
    if dim <= preferred:
        return dim
    for t in range(preferred, 0, -1):
        if dim % t == 0:
            return t
    return dim


# ---------------------------------------------------------------------------
# Tiled matmul kernel (fused QKV projection and output projection)
# ---------------------------------------------------------------------------
def _matmul_kernel(x_ref, w_ref, o_ref, acc_ref):
    @pl.when(pl.program_id(2) == 0)
    def _init():
        acc_ref[...] = jnp.zeros_like(acc_ref)

    acc_ref[...] += jnp.dot(x_ref[...], w_ref[...],
                            preferred_element_type=jnp.float32)

    @pl.when(pl.program_id(2) == pl.num_programs(2) - 1)
    def _store():
        o_ref[...] = acc_ref[...].astype(o_ref.dtype)


def matmul(x, w, out_dtype=None, *, tm=256, tn=256, tk=512):
    """x: [M, K] @ w: [K, N] -> [M, N], f32 accumulation on the MXU."""
    M, K = x.shape
    K2, N = w.shape
    assert K == K2
    if out_dtype is None:
        out_dtype = x.dtype
    btm, btn, btk = _pick_tile(M, tm), _pick_tile(N, tn), _pick_tile(K, tk)
    grid = (M // btm, N // btn, K // btk)
    return pl.pallas_call(
        _matmul_kernel,
        out_shape=jax.ShapeDtypeStruct((M, N), out_dtype),
        grid=grid,
        in_specs=[
            pl.BlockSpec((btm, btk), lambda i, j, k: (i, k)),
            pl.BlockSpec((btk, btn), lambda i, j, k: (k, j)),
        ],
        out_specs=pl.BlockSpec((btm, btn), lambda i, j, k: (i, j)),
        scratch_shapes=[pltpu.VMEM((btm, btn), jnp.float32)],
        compiler_params=pltpu.CompilerParams(
            dimension_semantics=("parallel", "parallel", "arbitrary")),
    )(x, w)


# ---------------------------------------------------------------------------
# Flash-style causal GQA attention kernel
# ---------------------------------------------------------------------------
def _flash_attn_kernel(q_ref, k_ref, v_ref, o_ref, m_sc, l_sc, acc_sc, *,
                       scale, num_heads, num_kv_heads, head_dim):
    qi = pl.program_id(1)
    ki = pl.program_id(2)
    nk = pl.num_programs(2)
    tq = q_ref.shape[1]
    tk = k_ref.shape[1]
    D = head_dim
    group = num_heads // num_kv_heads

    @pl.when(ki == 0)
    def _init():
        m_sc[...] = jnp.full_like(m_sc, NEG_INF)
        l_sc[...] = jnp.zeros_like(l_sc)
        acc_sc[...] = jnp.zeros_like(acc_sc)

    # Skip kv blocks that lie entirely in the future (fully causally masked).
    @pl.when(ki * tk <= qi * tq + (tq - 1))
    def _compute():
        q_all = q_ref[0]          # [tq, H*D]    resident across the kv axis
        k_all = k_ref[0]          # [tk, KVH*D]
        v_all = v_ref[0]          # [tk, KVH*D]

        # Causal mask built once per (q-block, kv-block), shared by all heads.
        qpos = qi * tq + lax.broadcasted_iota(jnp.int32, (tq, tk), 0)
        kpos = ki * tk + lax.broadcasted_iota(jnp.int32, (tq, tk), 1)
        causal = kpos <= qpos

        for kvh in range(num_kv_heads):
            # K/V tile of this GQA group: sliced once, reused by `group` q-heads.
            k_h = k_all[:, kvh * D:(kvh + 1) * D]       # [tk, D]
            v_h = v_all[:, kvh * D:(kvh + 1) * D]       # [tk, D]
            for g in range(group):
                h = kvh * group + g
                q_h = q_all[:, h * D:(h + 1) * D]       # [tq, D]

                # QK^T contracting on D directly (no k.T relayout).
                s = lax.dot_general(
                    q_h, k_h, (((1,), (1,)), ((), ())),
                    preferred_element_type=jnp.float32) * scale   # [tq, tk] f32
                s = jnp.where(causal, s, NEG_INF)

                m_prev = m_sc[:, h:h + 1]
                m_new = jnp.maximum(m_prev, jnp.max(s, axis=-1, keepdims=True))
                alpha = jnp.exp(m_prev - m_new)
                p = jnp.exp(s - m_new)

                l_sc[:, h:h + 1] = (alpha * l_sc[:, h:h + 1]
                                    + jnp.sum(p, axis=-1, keepdims=True))
                pv = lax.dot_general(
                    p.astype(v_h.dtype), v_h, (((1,), (0,)), ((), ())),
                    preferred_element_type=jnp.float32)           # [tq, D] f32
                acc_sc[:, h * D:(h + 1) * D] = (
                    alpha * acc_sc[:, h * D:(h + 1) * D] + pv)
                m_sc[:, h:h + 1] = m_new

    @pl.when(ki == nk - 1)
    def _finalize():
        inv_l = pl.reciprocal(l_sc[...], approx=True)             # [tq, H], EUP
        for h in range(num_heads):
            acc_sc[:, h * D:(h + 1) * D] = (
                acc_sc[:, h * D:(h + 1) * D] * inv_l[:, h:h + 1])
        # Single lane-dense [tq, H*D] store in the final [B, S, H*D] layout.
        o_ref[0] = acc_sc[...].astype(o_ref.dtype)


def flash_causal_gqa_attention(q, k, v, scale, *, num_heads, num_kv_heads,
                               head_dim, tq=128, tk=128):
    """q: [B, S, H*D]; k, v: [B, S, KVH*D] -> [B, S, H*D] (dtype of q)."""
    B, S, HD = q.shape
    KVHD = k.shape[-1]
    btq, btk = _pick_tile(S, tq), _pick_tile(S, tk)
    grid = (B, S // btq, S // btk)
    kernel = functools.partial(
        _flash_attn_kernel, scale=scale, num_heads=num_heads,
        num_kv_heads=num_kv_heads, head_dim=head_dim)
    return pl.pallas_call(
        kernel,
        out_shape=jax.ShapeDtypeStruct((B, S, HD), q.dtype),
        grid=grid,
        in_specs=[
            pl.BlockSpec((1, btq, HD), lambda b, qi, ki: (b, qi, 0)),
            pl.BlockSpec((1, btk, KVHD), lambda b, qi, ki: (b, ki, 0)),
            pl.BlockSpec((1, btk, KVHD), lambda b, qi, ki: (b, ki, 0)),
        ],
        out_specs=pl.BlockSpec((1, btq, HD), lambda b, qi, ki: (b, qi, 0)),
        scratch_shapes=[
            pltpu.VMEM((btq, num_heads), jnp.float32),   # running max m
            pltpu.VMEM((btq, num_heads), jnp.float32),   # running sum l
            pltpu.VMEM((btq, HD), jnp.float32),          # f32 output accumulator
        ],
        compiler_params=pltpu.CompilerParams(
            dimension_semantics=("parallel", "parallel", "arbitrary")),
    )(q, k, v)


# ---------------------------------------------------------------------------
# Rotary embedding (FlashRotaryEmbedding, interleaved=False == rotate-half)
# ---------------------------------------------------------------------------
def rotary_cos_sin(seq_len, dim, base, scaling_factor):
    inv_freq = 1.0 / (base ** (jnp.arange(0, dim, 2, dtype=jnp.float32) / dim))
    t = jnp.arange(seq_len, dtype=jnp.float32) / scaling_factor
    freqs = jnp.outer(t, inv_freq)                      # [S, D/2]
    return jnp.cos(freqs), jnp.sin(freqs)


def apply_rotary(x, cos, sin):
    # x: [B, S, nH, D]; cos/sin: [S, D/2]; non-interleaved (rotate-half) style.
    orig_dtype = x.dtype
    xf = x.astype(jnp.float32)
    d2 = xf.shape[-1] // 2
    x1, x2 = xf[..., :d2], xf[..., d2:]
    c = cos[None, :, None, :]
    s = sin[None, :, None, :]
    out = jnp.concatenate([x1 * c - x2 * s, x2 * c + x1 * s], axis=-1)
    return out.astype(orig_dtype)


# ---------------------------------------------------------------------------
# LlamaAttention module (synthetic config, deterministic weights)
# ---------------------------------------------------------------------------
class LlamaAttentionPallas:
    def __init__(self, key, hidden_size=32, num_heads=4, num_kv_heads=2,
                 max_positions=4096, rope_theta=10000.0, dtype=jnp.bfloat16):
        assert hidden_size % num_heads == 0
        assert num_heads % num_kv_heads == 0
        self.hidden_size = hidden_size
        self.num_heads = num_heads
        self.num_kv_heads = num_kv_heads
        self.head_dim = hidden_size // num_heads
        self.rotary_ndims = self.head_dim
        self.rope_theta = rope_theta
        # config.rope_scaling is None -> scaling_factor = max(max_pos/4096, 1)
        self.scaling_factor = max(max_positions / 4096.0, 1.0)
        self.dtype = dtype

        kq, kk, kv, ko = jax.random.split(key, 4)

        def xavier(k, fan_in, fan_out):
            std = math.sqrt(2.0 / (fan_in + fan_out))
            # stored as [in, out] so that y = x @ W (== torch x @ W.T)
            return (jax.random.normal(k, (fan_in, fan_out), jnp.float32) * std
                    ).astype(dtype)

        self.wq = xavier(kq, hidden_size, num_heads * self.head_dim)
        self.wk = xavier(kk, hidden_size, num_kv_heads * self.head_dim)
        self.wv = xavier(kv, hidden_size, num_kv_heads * self.head_dim)
        self.wo = xavier(ko, num_heads * self.head_dim, hidden_size)
        # Fused QKV weight: one matmul, one HBM read of the activations.
        self.w_qkv = jnp.concatenate([self.wq, self.wk, self.wv], axis=1)

    def __call__(self, hidden_states):
        # hidden_states: [seq, batch, hidden] (f32); output: [seq, batch, hidden] (f32)
        S, B, Hd = hidden_states.shape
        H, KVH, D = self.num_heads, self.num_kv_heads, self.head_dim
        x = jnp.transpose(hidden_states, (1, 0, 2))          # [B, S, hidden]
        x2d = x.reshape(B * S, Hd).astype(self.dtype)         # bf16 MXU feed

        qd, kd = H * D, KVH * D
        qkv = matmul(x2d, self.w_qkv)                          # [B*S, qd + 2*kd]
        q = qkv[:, :qd].reshape(B, S, H, D)
        k = qkv[:, qd:qd + kd].reshape(B, S, KVH, D)
        v = qkv[:, qd + kd:].reshape(B, S, kd)                 # [B, S, KVH*D]

        cos, sin = rotary_cos_sin(S, self.rotary_ndims, self.rope_theta,
                                  self.scaling_factor)
        q = apply_rotary(q, cos, sin).reshape(B, S, qd)        # [B, S, H*D]
        k = apply_rotary(k, cos, sin).reshape(B, S, kd)        # [B, S, KVH*D]

        scale = 1.0 / math.sqrt(D)
        o = flash_causal_gqa_attention(q, k, v, scale, num_heads=H,
                                       num_kv_heads=KVH, head_dim=D)

        out = matmul(o.reshape(B * S, qd), self.wo, out_dtype=jnp.float32)
        out = out.reshape(B, S, self.hidden_size)
        return jnp.transpose(out, (1, 0, 2))                   # [S, B, hidden]

    # Pure-JAX f32 reference for validation (same bf16-stored weights, upcast).
    def reference(self, hidden_states):
        S, B, Hd = hidden_states.shape
        H, KVH, D = self.num_heads, self.num_kv_heads, self.head_dim
        wq, wk, wv, wo = (w.astype(jnp.float32)
                          for w in (self.wq, self.wk, self.wv, self.wo))
        x = jnp.transpose(hidden_states, (1, 0, 2)).astype(jnp.float32)
        q = (x @ wq).reshape(B, S, H, D)
        k = (x @ wk).reshape(B, S, KVH, D)
        v = (x @ wv).reshape(B, S, KVH, D)
        cos, sin = rotary_cos_sin(S, self.rotary_ndims, self.rope_theta,
                                  self.scaling_factor)
        q = apply_rotary(q, cos, sin)
        k = apply_rotary(k, cos, sin)
        group = H // KVH
        k = jnp.repeat(k, group, axis=2)
        v = jnp.repeat(v, group, axis=2)
        qh = jnp.transpose(q, (0, 2, 1, 3))
        kh = jnp.transpose(k, (0, 2, 1, 3))
        vh = jnp.transpose(v, (0, 2, 1, 3))
        s = jnp.einsum("bhqd,bhkd->bhqk", qh, kh) / math.sqrt(D)
        mask = jnp.tril(jnp.ones((S, S), bool))
        s = jnp.where(mask[None, None], s, NEG_INF)
        p = jax.nn.softmax(s, axis=-1)
        o = jnp.einsum("bhqk,bhkd->bhqd", p, vh)
        o = jnp.transpose(o, (0, 2, 1, 3)).reshape(B, S, -1)
        out = o @ wo
        return jnp.transpose(out, (1, 0, 2))


if __name__ == "__main__":
    key = jax.random.PRNGKey(0)
    k_param, k_inp = jax.random.split(key)

    seq, batch, hidden = 8, 2, 32
    attn = LlamaAttentionPallas(k_param, hidden_size=hidden, num_heads=4,
                                num_kv_heads=2)

    hidden_states = jax.random.normal(k_inp, (seq, batch, hidden), jnp.float32)

    out = jax.block_until_ready(attn(hidden_states))
    ref = attn.reference(hidden_states)

    assert out.shape == (seq, batch, hidden)
    # bf16 MXU operands + approx reciprocal -> compare at bf16-level tolerance.
    rel = jnp.linalg.norm(out - ref) / jnp.linalg.norm(ref)
    assert rel < 3e-2, f"relative error too large: {rel}"
    assert jnp.allclose(out, ref, atol=5e-2, rtol=5e-2), "mismatch vs reference"
    print("KERNEL_OK")
</pallas_src>

<mosaic_0001>
module attributes {stable_mosaic.version = 11 : i64} {
  func.func @_matmul_kernel(%arg0: i32, %arg1: i32, %arg2: i32, %arg3: memref<16x32xbf16, #tpu.memory_space<vmem>>, %arg4: memref<32x64xbf16, #tpu.memory_space<vmem>>, %arg5: memref<16x64xbf16, #tpu.memory_space<vmem>>, %arg6: memref<16x64xf32, #tpu.memory_space<vmem>>) attributes {dimension_semantics = [#tpu.dimension_semantics<parallel>, #tpu.dimension_semantics<parallel>, #tpu.dimension_semantics<arbitrary>], iteration_bounds = array<i64: 1, 1, 1>, scalar_prefetch = 0 : i64, scratch_operands = 1 : i64, tpu.core_type = #tpu.core_type<tc>, window_params = [{transform_indices = @transform_0, window_bounds = array<i64: 16, 32>}, {transform_indices = @transform_1, window_bounds = array<i64: 32, 64>}, {transform_indices = @transform_2, window_bounds = array<i64: 16, 64>}]} {
    %c0_i32 = arith.constant 0 : i32
    %0 = arith.cmpi eq, %arg2, %c0_i32 : i32
    %1 = arith.extui %0 : i1 to i32
    %c0_i32_0 = arith.constant 0 : i32
    %2 = arith.cmpi ne, %1, %c0_i32_0 : i32
    scf.if %2 {
      %cst_10 = arith.constant 0.000000e+00 : f32
      %12 = vector.broadcast %cst_10 : f32 to vector<16x64xf32>
      %c0_11 = arith.constant 0 : index
      %c0_12 = arith.constant 0 : index
      %13 = vector.load %arg6[%c0_11, %c0_12] : memref<16x64xf32, #tpu.memory_space<vmem>>, vector<16x64xf32>
      tpu.vector_store %arg6[%c0_11, %c0_12], %12 {strides = array<i32>} : memref<16x64xf32, #tpu.memory_space<vmem>>, vector<16x64xf32>,
    } else {
    }
    %c0 = arith.constant 0 : index
    %c0_1 = arith.constant 0 : index
    %3 = vector.load %arg6[%c0, %c0_1] : memref<16x64xf32, #tpu.memory_space<vmem>>, vector<16x64xf32>
    %c0_2 = arith.constant 0 : index
    %c0_3 = arith.constant 0 : index
    %4 = vector.load %arg3[%c0_2, %c0_3] : memref<16x32xbf16, #tpu.memory_space<vmem>>, vector<16x32xbf16>
    %c0_4 = arith.constant 0 : index
    %c0_5 = arith.constant 0 : index
    %5 = vector.load %arg4[%c0_4, %c0_5] : memref<32x64xbf16, #tpu.memory_space<vmem>>, vector<32x64xbf16>
    %cst = arith.constant dense<0.000000e+00> : vector<16x64xf32>
    %6 = tpu.matmul %4, %5, %cst {dimension_numbers = #tpu.dot_dimension_numbers<[1], [0], [0], [1], [0, 0, 1, 1], [], []>} : vector<16x32xbf16>, vector<32x64xbf16>, vector<16x64xf32> -> vector<16x64xf32>
    %7 = arith.addf %3, %6 : vector<16x64xf32>
    %c0_6 = arith.constant 0 : index
    %c0_7 = arith.constant 0 : index
    %8 = vector.load %arg6[%c0_6, %c0_7] : memref<16x64xf32, #tpu.memory_space<vmem>>, vector<16x64xf32>
    tpu.vector_store %arg6[%c0_6, %c0_7], %7 {strides = array<i32>} : memref<16x64xf32, #tpu.memory_space<vmem>>, vector<16x64xf32>,
    %c0_i32_8 = arith.constant 0 : i32
    %9 = arith.cmpi eq, %arg2, %c0_i32_8 : i32
    %10 = arith.extui %9 : i1 to i32
    %c0_i32_9 = arith.constant 0 : i32
    %11 = arith.cmpi ne, %10, %c0_i32_9 : i32
    scf.if %11 {
      %c0_10 = arith.constant 0 : index
      %c0_11 = arith.constant 0 : index
      %12 = vector.load %arg6[%c0_10, %c0_11] : memref<16x64xf32, #tpu.memory_space<vmem>>, vector<16x64xf32>
      %13 = arith.truncf %12 : vector<16x64xf32> to vector<16x64xbf16>
      %c0_12 = arith.constant 0 : index
      %c0_13 = arith.constant 0 : index
      %14 = vector.load %arg5[%c0_12, %c0_13] : memref<16x64xbf16, #tpu.memory_space<vmem>>, vector<16x64xbf16>
      tpu.vector_store %arg5[%c0_12, %c0_13], %13 {strides = array<i32>} : memref<16x64xbf16, #tpu.memory_space<vmem>>, vector<16x64xbf16>,
    } else {
    }
    return
  }
  func.func @transform_0(%arg0: i32, %arg1: i32, %arg2: i32) -> (i32, i32) {
    %c0_i32 = arith.constant 0 : i32
    return %arg0, %arg2 : i32, i32
  }
  func.func @transform_1(%arg0: i32, %arg1: i32, %arg2: i32) -> (i32, i32) {
    %c0_i32 = arith.constant 0 : i32
    return %arg2, %arg1 : i32, i32
  }
  func.func @transform_2(%arg0: i32, %arg1: i32, %arg2: i32) -> (i32, i32) {
    %c0_i32 = arith.constant 0 : i32
    return %arg0, %arg1 : i32, i32
  }
}

</mosaic_0001>

<llo_original>
// kernel: tpu_custom_call.1
$region0: #{tpu_custom_call.1}
  #allocation0 [shape = 'u32[]', space=smem, size = 0x4, offset = 0x4, fixed_abs, tag = 'smem constant byte address 0x4 - core index']
  #allocation1 [shape = 'u32[144,128]{1,0:T(1,128)}', space=vmem, size = 0x12000, scoped, tag = 'internal scratch']
  #allocation2 [shape = 'f32[16,64]{1,0:T(8,128)}', space=vmem, size = 0x2000, scoped, tag = 'scratch operand']
  %s0 = inlined_call_operand.hbm [shape: bf16[16,32], index: 0, kind: input, shape index: {}]
  %s1 = inlined_call_operand.hbm [shape: bf16[32,64], index: 1, kind: input, shape index: {}]
  %s2 = inlined_call_operand.hbm [shape: bf16[16,64], index: 2, kind: output, shape index: {}]
  %s3 = sld [smem:[#allocation0]]
  $region34: #{tpu_custom_call.1} parent=0
    _
  %s5 = ssub.s32 1, %s3
  %s6 = scalar_select 0, %s5, %s3
  $region1: #{tpu_custom_call.1} parent=0
    #allocation3 [shape = 'u8[4096]{0}', space=vmem, size = 0x1000, scoped, tag = 'input window, operand 0, single buffered']
    #allocation4 [shape = 's32[1]{0}', space=sflag, size = 0x4, scoped, tag = 'scoped memory for tpu_custom_call.1']
    #allocation5 [shape = 's32[1]{0}', space=sflag, size = 0x4, scoped, tag = 'scoped memory for tpu_custom_call.1']
    #allocation6 [shape = 'u8[8192]{0}', space=vmem, size = 0x2000, scoped, tag = 'input window, operand 1, single buffered']
    #allocation7 [shape = 's32[1]{0}', space=sflag, size = 0x4, scoped, tag = 'scoped memory for tpu_custom_call.1']
    #allocation8 [shape = 'u8[4096]{0}', space=vmem, size = 0x1000, scoped, tag = 'output window, operand 0, single buffered']
    %7 = vsyncpa [#allocation4], 0
    %8 = vsyncpa [#allocation7], 0
    %9 = vsyncpa [#allocation5], 0
    // Predicated region
    $region2: #{tpu_custom_call.1} parent=1 // pred_check
      _
    $region3: #{tpu_custom_call.1} parent=1 // pred_check_branch
      %11 = sbr.rel (0) target = $region5
    $region4: #{tpu_custom_call.1} parent=1 // pred_region
      %s13 = ssub.s32 128, 128
      %14 = vsyncadd [#allocation4], %s13
      %s15 = sshll.u32 [#allocation3], 4
      %s16 = int_to_ptr.vmem [resolvable:$true] %s15
      %21 = dma.hbm_to_vmem [thread:$0]  %s0, 128, %s16, [#allocation4], 64, 64, 4
    $region5: #{tpu_custom_call.1} parent=1 // pred_fallthru
      _
    // Predicated region
    $region6: #{tpu_custom_call.1} parent=1 // pred_check
      _
    $region7: #{tpu_custom_call.1} parent=1 // pred_check_branch
      %23 = sbr.rel (0) target = $region9
    $region8: #{tpu_custom_call.1} parent=1 // pred_region
      %s25 = ssub.s32 256, 256
      %26 = vsyncadd [#allocation7], %s25
      %s27 = sshll.u32 [#allocation6], 4
      %s28 = int_to_ptr.vmem [resolvable:$true] %s27
      %33 = dma.hbm_to_vmem [thread:$0]  %s1, 256, %s28, [#allocation7], 64, 64, 4
    $region9: #{tpu_custom_call.1} parent=1 // pred_fallthru
      _
    // Predicated region
    $region10: #{tpu_custom_call.1} parent=1 // pred_check
      _
    $region11: #{tpu_custom_call.1} parent=1 // pred_check_branch
      %35 = sbr.rel (0) target = $region13
    $region12: #{tpu_custom_call.1} parent=1 // pred_region
      %36 = dma.done [#allocation4], 128
    $region13: #{tpu_custom_call.1} parent=1 // pred_fallthru
      _
    // Predicated region
    $region14: #{tpu_custom_call.1} parent=1 // pred_check
      _
    $region15: #{tpu_custom_call.1} parent=1 // pred_check_branch
      %38 = sbr.rel (0) target = $region17
    $region16: #{tpu_custom_call.1} parent=1 // pred_region
      %39 = dma.done [#allocation7], 256
    $region17: #{tpu_custom_call.1} parent=1 // pred_fallthru
      _
    %p41 = scmp.eq.s32.totalorder 0, 0
    // Predicated region
    $region18: #{tpu_custom_call.1} parent=1 // pred_check
      %p42 = pneg %p41
    $region19: #{tpu_custom_call.1} parent=1 // pred_check_branch
      %44 = sbr.rel (%p42) target = $region21
    $region20: #{tpu_custom_call.1} parent=1 // pred_region
      %vm45 = vcmask 523264
      %46 = vst.msk [vmem:[#allocation2] sm:$0xff] %vm45, 0.0
      %47 = vst.msk [vmem:[#allocation2 + $0x8] sm:$0xff] %vm45, 0.0
    $region21: #{tpu_custom_call.1} parent=1 // pred_fallthru
      _
    %v48 = vld [vmem:[#allocation2] sm:$0xff]
    %v49 = vld [vmem:[#allocation2 + $0x8] sm:$0xff]
    %v50 = vld [vmem:[#allocation3] sm:$0xf]
    %v51 = vld [vmem:[#allocation3 + $0x4] sm:$0xf]
    %v52 = vld [vmem:[#allocation6] sm:$0xf]
    %v53 = vld [vmem:[#allocation6 + $0x4] sm:$0xf]
    %v54 = vld [vmem:[#allocation6 + $0x8] sm:$0xf]
    %v55 = vld [vmem:[#allocation6 + $0xc] sm:$0xf]
    %v58 = vunpack.c.l.b16 %v50
    %v59 = vunpack.c.l.b16 %v51
    %v60 = vpack.c.b16 %v59, %v58
    %v65 = vunpack.c.l.b16 %v52
    %v66 = vunpack.c.l.b16 %v53
    %v67 = vunpack.c.l.b16 %v54
    %v68 = vunpack.c.l.b16 %v55
    %v69 = vpack.c.b16 %v66, %v65
    %v70 = vpack.c.b16 %v68, %v67
    %vm73 = vcmask 261120
    %v75 = vsel %vm73, %v60, 0
    %77 = vmatprep.subr.bf16.mxu0 0
    %78 = vmatpush1.bf16.msra.mxu0 0
    %79 = vmatprep.subr.bf16.mxu0 0
    %80 = vmatpush1.bf16.msra.mxu0 0
    %81 = vmatprep.subr.bf16.mxu0 0
    %82 = vmatpush1.bf16.msra.mxu0 0
    %83 = vmatprep.subr.bf16.mxu0 0
    %84 = vmatpush1.bf16.msra.mxu0 0
    %85 = vmatprep.subr.bf16.mxu0 0
    %86 = vmatpush1.bf16.msra.mxu0 0
    %87 = vmatprep.subr.bf16.mxu0 0
    %88 = vmatpush1.bf16.msra.mxu0 0
    %89 = vmatprep.subr.bf16.mxu0 0
    %90 = vmatpush1.bf16.msra.mxu0 %v70
    %91 = vmatprep.subr.bf16.mxu0 0
    %92 = vmatpush1.bf16.msra.mxu0 %v69
    %93 = vmatprep.subr.bf16.mxu0 0
    %94 = vmatpush2.bf16.msra.mxu0 0
    %95 = vmatprep.subr.bf16.mxu0 0
    %96 = vmatpush2.bf16.msra.mxu0 0
    %97 = vmatprep.subr.bf16.mxu0 0
    %98 = vmatpush2.bf16.msra.mxu0 0
    %99 = vmatprep.subr.bf16.mxu0 0
    %100 = vmatpush2.bf16.msra.mxu0 0
    %101 = vmatprep.subr.bf16.mxu0 0
    %102 = vmatpush2.bf16.msra.mxu0 0
    %103 = vmatprep.subr.bf16.mxu0 0
    %104 = vmatpush2.bf16.msra.mxu0 0
    %105 = vmatprep.subr.bf16.mxu0 0
    %106 = vmatpush2.bf16.msra.mxu0 0
    %107 = vmatprep.subr.bf16.mxu0 0
    %108 = vmatpush2.bf16.msra.mxu0 0
    %109 = vmatprep.mubr.bf16.mxu0 0
    %110 = vmatmul.mubr.bf16.gmra.mxu0 %v75
    %v111 = vpop.f32.mrf.mxu0
    %v112 = vadd.f32 0.0, %v111
    %v113 = vpop.f32.mrf.mxu0
    %v114 = vpop.f32.mrf.mxu0
    %v115 = vadd.f32 0.0, %v114
    %v116 = vpop.f32.mrf.mxu0
    %117 = vdwg.mxu0
    %v118 = vadd.f32 %v48, %v112
    %v119 = vadd.f32 %v49, %v115
    %vm120 = vcmask 523264
    %121 = vst.msk [vmem:[#allocation2] sm:$0xff] %vm120, %v118
    %122 = vst.msk [vmem:[#allocation2 + $0x8] sm:$0xff] %vm120, %v119
    // Predicated region
    $region22: #{tpu_custom_call.1} parent=1 // pred_check
      %p123 = pneg %p41
    $region23: #{tpu_custom_call.1} parent=1 // pred_check_branch
      %125 = sbr.rel (%p123) target = $region25
    $region24: #{tpu_custom_call.1} parent=1 // pred_region
      %v126 = vld [vmem:[#allocation2] sm:$0xff]
      %v127 = vld [vmem:[#allocation2 + $0x8] sm:$0xff]
      %v128 = vpack.c.bf16 %v127, %v126
      %v130 = vunpack.c.l.b16 %v128
      %v131 = vunpack.c.h.b16 %v128
      %v132 = vpack.c.b16 %v130, %v130
      %v133 = vpack.c.b16 %v131, %v131
      %vm136 = vcmask 519168
      %137 = vst.msk [vmem:[#allocation8] sm:$0xf] %vm136, %v132
      %138 = vst.msk [vmem:[#allocation8 + $0x4] sm:$0xf] %vm136, %v133
    $region25: #{tpu_custom_call.1} parent=1 // pred_fallthru
      _
    // Predicated region
    $region26: #{tpu_custom_call.1} parent=1 // pred_check
      _
    $region27: #{tpu_custom_call.1} parent=1 // pred_check_branch
      %140 = sbr.rel (0) target = $region29
    $region28: #{tpu_custom_call.1} parent=1 // pred_region
      %s142 = ssub.s32 128, 128
      %143 = vsyncadd [#allocation5], %s142
      %s144 = sshll.u32 [#allocation8], 4
      %s145 = int_to_ptr.vmem [resolvable:$true] %s144
      %150 = dma.vmem_to_hbm [thread:$0]  %s145, 128, %s2, [#allocation5], 64, 64, 4
    $region29: #{tpu_custom_call.1} parent=1 // pred_fallthru
      _
    // Predicated region
    $region30: #{tpu_custom_call.1} parent=1 // pred_check
      _
    $region31: #{tpu_custom_call.1} parent=1 // pred_check_branch
      %152 = sbr.rel (0) target = $region33
    $region32: #{tpu_custom_call.1} parent=1 // pred_region
      %153 = dma.done [#allocation5], 128
    $region33: #{tpu_custom_call.1} parent=1 // pred_fallthru
      _
    %154 = vsyncpa [#allocation4], 1
    %155 = vsyncpa [#allocation7], 1
    %156 = vsyncpa [#allocation5], 1

</llo_original>
